<compile_context>
chip_gen: v6e
topology: v6e:2x2x1
jax: 0.10.0
libtpu: 0.0.40
codegen_flags: <defaults>
</compile_context>

<pallas_src>
import jax
import jax.numpy as jnp
from jax.experimental import pallas as pl
from jax.experimental.pallas import tpu as pltpu

HIDDEN = [128, 256, 128]


def qnet_kernel(x_ref,
                w0_ref, b0_ref,
                w1_ref, b1_ref,
                w2_ref, b2_ref,
                w3_ref, b3_ref,
                out_ref):
    """Fused 4-layer MLP forward on one (tb, state) batch tile.

    bf16 MXU matmuls with f32 accumulation; bias-add / ReLU in f32, then the
    activation is immediately re-packed to bf16 so the (tb, 256) intermediates
    never live in f32 between layers.
    """
    h = x_ref[...]  # already bf16

    h = jnp.maximum(
        jnp.dot(h, w0_ref[...], preferred_element_type=jnp.float32) + b0_ref[...],
        0.0).astype(jnp.bfloat16)

    h = jnp.maximum(
        jnp.dot(h, w1_ref[...], preferred_element_type=jnp.float32) + b1_ref[...],
        0.0).astype(jnp.bfloat16)

    h = jnp.maximum(
        jnp.dot(h, w2_ref[...], preferred_element_type=jnp.float32) + b2_ref[...],
        0.0).astype(jnp.bfloat16)

    out_ref[...] = (
        jnp.dot(h, w3_ref[...], preferred_element_type=jnp.float32) + b3_ref[...]
    )


def _round_up(n, m):
    return ((n + m - 1) // m) * m


def prepare_params(params):
    """One-time parameter prep: bf16 (in, out) weights, f32 (1, out) biases.

    Do this ONCE (outside the training/inference loop) so no padding/cast
    passes run per forward call.
    """
    prepped = []
    for w, b in params:
        prepped.append((jnp.asarray(w, jnp.bfloat16),
                        jnp.asarray(b, jnp.float32).reshape(1, -1)))
    return prepped


def qnetwork_forward(x, prepped_params, *, tb=512):
    """Fused QNetwork forward.

    x: (batch, state_size) float32 (or bf16).
    prepped_params: output of prepare_params() — bf16 (in, out) weights,
                    f32 (1, out) biases.
    tb: batch tile size; rounded to a multiple of 16 and capped so the grid
        has >= 2 steps when batch allows (v7x megacore).
    """
    batch, state_size = x.shape
    action_size = prepped_params[-1][0].shape[1]

    # Batch tile: multiple of 16 (bf16 packs 2 rows/sublane), capped by batch.
    tb = max(16, _round_up(min(tb, batch), 16))
    # v7x: keep at least 2 (parallel) grid steps so both TensorCores work.
    if batch > 16:
        tb = min(tb, _round_up(-(-batch // 2), 16))

    b_pad = _round_up(batch, tb)

    # Single bf16 cast of the (small) input; pad batch only if needed.
    x_bf16 = x.astype(jnp.bfloat16)
    if b_pad != batch:
        x_bf16 = jnp.pad(x_bf16, ((0, b_pad - batch), (0, 0)))

    flat_args = [x_bf16]
    in_specs = [pl.BlockSpec((tb, state_size), lambda i: (i, 0))]

    def resident(shape):
        # Full-array block, same block index every grid step:
        # DMA'd once, stays VMEM-resident across the whole batch grid.
        return pl.BlockSpec(shape, lambda i: (0, 0))

    for w, b in prepped_params:
        flat_args.append(w)
        flat_args.append(b)
        in_specs.append(resident(w.shape))
        in_specs.append(resident(b.shape))

    # Advisory cost model (helps XLA schedule around this small kernel).
    flops = 2 * b_pad * sum(int(w.shape[0]) * int(w.shape[1])
                            for w, _ in prepped_params)
    bytes_accessed = (
        x_bf16.size * 2
        + sum(w.size * 2 + b.size * 4 for w, b in prepped_params)
        + b_pad * action_size * 4
    )
    cost = pl.CostEstimate(flops=flops, transcendentals=0,
                           bytes_accessed=bytes_accessed)

    out_padded = pl.pallas_call(
        qnet_kernel,
        out_shape=jax.ShapeDtypeStruct((b_pad, action_size), jnp.float32),
        grid=(b_pad // tb,),
        in_specs=in_specs,
        out_specs=pl.BlockSpec((tb, action_size), lambda i: (i, 0)),
        compiler_params=pltpu.CompilerParams(
            dimension_semantics=("parallel",),
        ),
        cost_estimate=cost,
    )(*flat_args)

    if b_pad != batch:
        out_padded = out_padded[:batch]
    return out_padded


def init_params(key, state_size, action_size):
    """Deterministic synthetic params mirroring nn.Linear shapes.

    PyTorch Linear(in, out) has weight (out, in), bias (out,). We build the
    equivalent and store the transposed weight (in, out) for the kernel.
    """
    dims = [state_size] + HIDDEN + [action_size]
    params = []
    for i in range(len(dims) - 1):
        fan_in, fan_out = dims[i], dims[i + 1]
        key, kw, kb = jax.random.split(key, 3)
        bound = 1.0 / jnp.sqrt(fan_in)
        w = jax.random.uniform(kw, (fan_in, fan_out), jnp.float32, -bound, bound)
        b = jax.random.uniform(kb, (1, fan_out), jnp.float32, -bound, bound)
        params.append((w, b))
    return params


def reference_forward_f32(x, params):
    """Pure-f32 reference (PyTorch semantics)."""
    h = x
    for i, (w, b) in enumerate(params):
        h = h @ w + b
        if i < len(params) - 1:
            h = jnp.maximum(h, 0.0)
    return h


def reference_forward_bf16(x, params):
    """Reference mirroring the kernel's bf16-operand / f32-accumulate matmuls."""
    h = x
    for i, (w, b) in enumerate(params):
        h = jnp.dot(h.astype(jnp.bfloat16), w.astype(jnp.bfloat16),
                    preferred_element_type=jnp.float32) + b
        if i < len(params) - 1:
            h = jnp.maximum(h, 0.0)
    return h


if __name__ == "__main__":
    state_size = 8
    action_size = 4
    batch = 32  # small demo batch -> tb=16, 2 grid steps, no batch padding

    key = jax.random.PRNGKey(0)
    key, kx = jax.random.split(key)
    x = jax.random.normal(kx, (batch, state_size), jnp.float32)

    params = init_params(key, state_size, action_size)
    prepped = prepare_params(params)  # one-time bf16 / layout prep

    out = qnetwork_forward(x, prepped)
    out = jax.block_until_ready(out)
    assert out.shape == (batch, action_size)

    # Tight check vs. a reference mirroring the kernel's bf16/f32 matmuls.
    ref_bf16 = reference_forward_bf16(x, params)
    assert jnp.allclose(out, ref_bf16, atol=2e-3, rtol=2e-3)

    # Loose sanity check vs. the pure-f32 PyTorch-semantics reference
    # (difference is only bf16 operand rounding on the MXU).
    ref_f32 = reference_forward_f32(x, params)
    assert jnp.allclose(out, ref_f32, atol=5e-2, rtol=5e-2)

    print("KERNEL_OK")
</pallas_src>

<mosaic_0001>
module attributes {stable_mosaic.version = 11 : i64} {
  func.func @qnet_kernel(%arg0: i32, %arg1: memref<16x8xbf16, #tpu.memory_space<vmem>>, %arg2: memref<8x128xbf16, #tpu.memory_space<vmem>>, %arg3: memref<1x128xf32, #tpu.memory_space<vmem>>, %arg4: memref<128x256xbf16, #tpu.memory_space<vmem>>, %arg5: memref<1x256xf32, #tpu.memory_space<vmem>>, %arg6: memref<256x128xbf16, #tpu.memory_space<vmem>>, %arg7: memref<1x128xf32, #tpu.memory_space<vmem>>, %arg8: memref<128x4xbf16, #tpu.memory_space<vmem>>, %arg9: memref<1x4xf32, #tpu.memory_space<vmem>>, %arg10: memref<16x4xf32, #tpu.memory_space<vmem>>) attributes {dimension_semantics = [#tpu.dimension_semantics<parallel>], iteration_bounds = array<i64: 2>, scalar_prefetch = 0 : i64, scratch_operands = 0 : i64, tpu.core_type = #tpu.core_type<tc>, window_params = [{transform_indices = @transform_0, window_bounds = array<i64: 16, 8>}, {pipeline_mode = #tpu.pipeline_mode<synchronous>, transform_indices = @transform_1, window_bounds = array<i64: 8, 128>}, {pipeline_mode = #tpu.pipeline_mode<synchronous>, transform_indices = @transform_2, window_bounds = array<i64: 1, 128>}, {pipeline_mode = #tpu.pipeline_mode<synchronous>, transform_indices = @transform_3, window_bounds = array<i64: 128, 256>}, {pipeline_mode = #tpu.pipeline_mode<synchronous>, transform_indices = @transform_4, window_bounds = array<i64: 1, 256>}, {pipeline_mode = #tpu.pipeline_mode<synchronous>, transform_indices = @transform_5, window_bounds = array<i64: 256, 128>}, {pipeline_mode = #tpu.pipeline_mode<synchronous>, transform_indices = @transform_6, window_bounds = array<i64: 1, 128>}, {pipeline_mode = #tpu.pipeline_mode<synchronous>, transform_indices = @transform_7, window_bounds = array<i64: 128, 4>}, {pipeline_mode = #tpu.pipeline_mode<synchronous>, transform_indices = @transform_8, window_bounds = array<i64: 1, 4>}, {transform_indices = @transform_9, window_bounds = array<i64: 16, 4>}]} {
    %c0 = arith.constant 0 : index
    %c0_0 = arith.constant 0 : index
    %0 = vector.load %arg1[%c0, %c0_0] : memref<16x8xbf16, #tpu.memory_space<vmem>>, vector<16x8xbf16>
    %c0_1 = arith.constant 0 : index
    %c0_2 = arith.constant 0 : index
    %1 = vector.load %arg2[%c0_1, %c0_2] : memref<8x128xbf16, #tpu.memory_space<vmem>>, vector<8x128xbf16>
    %cst = arith.constant dense<0.000000e+00> : vector<16x128xf32>
    %2 = tpu.matmul %0, %1, %cst {dimension_numbers = #tpu.dot_dimension_numbers<[1], [0], [0], [1], [0, 0, 1, 1], [], []>} : vector<16x8xbf16>, vector<8x128xbf16>, vector<16x128xf32> -> vector<16x128xf32>
    %c0_3 = arith.constant 0 : index
    %c0_4 = arith.constant 0 : index
    %3 = vector.load %arg3[%c0_3, %c0_4] : memref<1x128xf32, #tpu.memory_space<vmem>>, vector<1x128xf32>
    %4 = vector.broadcast %3 : vector<1x128xf32> to vector<16x128xf32>
    %5 = arith.addf %2, %4 : vector<16x128xf32>
    %cst_5 = arith.constant 0.000000e+00 : f32
    %6 = vector.broadcast %cst_5 : f32 to vector<16x128xf32>
    %7 = arith.maximumf %5, %6 : vector<16x128xf32>
    %8 = arith.truncf %7 : vector<16x128xf32> to vector<16x128xbf16>
    %c0_6 = arith.constant 0 : index
    %c0_7 = arith.constant 0 : index
    %9 = vector.load %arg4[%c0_6, %c0_7] : memref<128x256xbf16, #tpu.memory_space<vmem>>, vector<128x256xbf16>
    %cst_8 = arith.constant dense<0.000000e+00> : vector<16x256xf32>
    %10 = tpu.matmul %8, %9, %cst_8 {dimension_numbers = #tpu.dot_dimension_numbers<[1], [0], [0], [1], [0, 0, 1, 1], [], []>} : vector<16x128xbf16>, vector<128x256xbf16>, vector<16x256xf32> -> vector<16x256xf32>
    %c0_9 = arith.constant 0 : index
    %c0_10 = arith.constant 0 : index
    %11 = vector.load %arg5[%c0_9, %c0_10] : memref<1x256xf32, #tpu.memory_space<vmem>>, vector<1x256xf32>
    %12 = vector.broadcast %11 : vector<1x256xf32> to vector<16x256xf32>
    %13 = arith.addf %10, %12 : vector<16x256xf32>
    %cst_11 = arith.constant 0.000000e+00 : f32
    %14 = vector.broadcast %cst_11 : f32 to vector<16x256xf32>
    %15 = arith.maximumf %13, %14 : vector<16x256xf32>
    %16 = arith.truncf %15 : vector<16x256xf32> to vector<16x256xbf16>
    %c0_12 = arith.constant 0 : index
    %c0_13 = arith.constant 0 : index
    %17 = vector.load %arg6[%c0_12, %c0_13] : memref<256x128xbf16, #tpu.memory_space<vmem>>, vector<256x128xbf16>
    %cst_14 = arith.constant dense<0.000000e+00> : vector<16x128xf32>
    %18 = tpu.matmul %16, %17, %cst_14 {dimension_numbers = #tpu.dot_dimension_numbers<[1], [0], [0], [1], [0, 0, 1, 1], [], []>} : vector<16x256xbf16>, vector<256x128xbf16>, vector<16x128xf32> -> vector<16x128xf32>
    %c0_15 = arith.constant 0 : index
    %c0_16 = arith.constant 0 : index
    %19 = vector.load %arg7[%c0_15, %c0_16] : memref<1x128xf32, #tpu.memory_space<vmem>>, vector<1x128xf32>
    %20 = vector.broadcast %19 : vector<1x128xf32> to vector<16x128xf32>
    %21 = arith.addf %18, %20 : vector<16x128xf32>
    %cst_17 = arith.constant 0.000000e+00 : f32
    %22 = vector.broadcast %cst_17 : f32 to vector<16x128xf32>
    %23 = arith.maximumf %21, %22 : vector<16x128xf32>
    %24 = arith.truncf %23 : vector<16x128xf32> to vector<16x128xbf16>
    %c0_18 = arith.constant 0 : index
    %c0_19 = arith.constant 0 : index
    %25 = vector.load %arg8[%c0_18, %c0_19] : memref<128x4xbf16, #tpu.memory_space<vmem>>, vector<128x4xbf16>
    %cst_20 = arith.constant dense<0.000000e+00> : vector<16x4xf32>
    %26 = tpu.matmul %24, %25, %cst_20 {dimension_numbers = #tpu.dot_dimension_numbers<[1], [0], [0], [1], [0, 0, 1, 1], [], []>} : vector<16x128xbf16>, vector<128x4xbf16>, vector<16x4xf32> -> vector<16x4xf32>
    %c0_21 = arith.constant 0 : index
    %c0_22 = arith.constant 0 : index
    %27 = vector.load %arg9[%c0_21, %c0_22] : memref<1x4xf32, #tpu.memory_space<vmem>>, vector<1x4xf32>
    %28 = vector.broadcast %27 : vector<1x4xf32> to vector<16x4xf32>
    %29 = arith.addf %26, %28 : vector<16x4xf32>
    %c0_23 = arith.constant 0 : index
    %c0_24 = arith.constant 0 : index
    %30 = vector.load %arg10[%c0_23, %c0_24] : memref<16x4xf32, #tpu.memory_space<vmem>>, vector<16x4xf32>
    tpu.vector_store %arg10[%c0_23, %c0_24], %29 {strides = array<i32>} : memref<16x4xf32, #tpu.memory_space<vmem>>, vector<16x4xf32>,
    return
  }
  func.func @transform_0(%arg0: i32) -> (i32, i32) {
    %c0_i32 = arith.constant 0 : i32
    %c0_i32_0 = arith.constant 0 : i32
    return %arg0, %c0_i32 : i32, i32
  }
  func.func @transform_1(%arg0: i32) -> (i32, i32) {
    %c0_i32 = arith.constant 0 : i32
    %c0_i32_0 = arith.constant 0 : i32
    %c0_i32_1 = arith.constant 0 : i32
    return %c0_i32, %c0_i32_0 : i32, i32
  }
  func.func @transform_2(%arg0: i32) -> (i32, i32) {
    %c0_i32 = arith.constant 0 : i32
    %c0_i32_0 = arith.constant 0 : i32
    %c0_i32_1 = arith.constant 0 : i32
    return %c0_i32, %c0_i32_0 : i32, i32
  }
  func.func @transform_3(%arg0: i32) -> (i32, i32) {
    %c0_i32 = arith.constant 0 : i32
    %c0_i32_0 = arith.constant 0 : i32
    %c0_i32_1 = arith.constant 0 : i32
    return %c0_i32, %c0_i32_0 : i32, i32
  }
  func.func @transform_4(%arg0: i32) -> (i32, i32) {
    %c0_i32 = arith.constant 0 : i32
    %c0_i32_0 = arith.constant 0 : i32
    %c0_i32_1 = arith.constant 0 : i32
    return %c0_i32, %c0_i32_0 : i32, i32
  }
  func.func @transform_5(%arg0: i32) -> (i32, i32) {
    %c0_i32 = arith.constant 0 : i32
    %c0_i32_0 = arith.constant 0 : i32
    %c0_i32_1 = arith.constant 0 : i32
    return %c0_i32, %c0_i32_0 : i32, i32
  }
  func.func @transform_6(%arg0: i32) -> (i32, i32) {
    %c0_i32 = arith.constant 0 : i32
    %c0_i32_0 = arith.constant 0 : i32
    %c0_i32_1 = arith.constant 0 : i32
    return %c0_i32, %c0_i32_0 : i32, i32
  }
  func.func @transform_7(%arg0: i32) -> (i32, i32) {
    %c0_i32 = arith.constant 0 : i32
    %c0_i32_0 = arith.constant 0 : i32
    %c0_i32_1 = arith.constant 0 : i32
    return %c0_i32, %c0_i32_0 : i32, i32
  }
  func.func @transform_8(%arg0: i32) -> (i32, i32) {
    %c0_i32 = arith.constant 0 : i32
    %c0_i32_0 = arith.constant 0 : i32
    %c0_i32_1 = arith.constant 0 : i32
    return %c0_i32, %c0_i32_0 : i32, i32
  }
  func.func @transform_9(%arg0: i32) -> (i32, i32) {
    %c0_i32 = arith.constant 0 : i32
    %c0_i32_0 = arith.constant 0 : i32
    return %arg0, %c0_i32 : i32, i32
  }
}

</mosaic_0001>

<llo_original>
// kernel: tpu_custom_call.1
$region0: #{tpu_custom_call.1}
  #allocation0 [shape = 'u32[]', space=smem, size = 0x4, offset = 0x4, fixed_abs, tag = 'smem constant byte address 0x4 - core index']
  #allocation1 [shape = 'u32[144,128]{1,0:T(1,128)}', space=vmem, size = 0x12000, scoped, tag = 'internal scratch']
  %s0 = inlined_call_operand.vmem [shape: bf16[32,8], index: 0, kind: input, shape index: {}]
  %s1 = inlined_call_operand.vmem [shape: bf16[8,128], index: 1, kind: input, shape index: {}]
  %s2 = inlined_call_operand.vmem [shape: f32[1,128], index: 2, kind: input, shape index: {}]
  %s3 = inlined_call_operand.hbm [shape: bf16[128,256], index: 3, kind: input, shape index: {}]
  %s4 = inlined_call_operand.vmem [shape: f32[1,256], index: 4, kind: input, shape index: {}]
  %s5 = inlined_call_operand.hbm [shape: bf16[256,128], index: 5, kind: input, shape index: {}]
  %s6 = inlined_call_operand.vmem [shape: f32[1,128], index: 6, kind: input, shape index: {}]
  %s7 = inlined_call_operand.vmem [shape: bf16[128,4], index: 7, kind: input, shape index: {}]
  %s8 = inlined_call_operand.vmem [shape: f32[1,4], index: 8, kind: input, shape index: {}]
  %s9 = inlined_call_operand.vmem [shape: f32[32,4], index: 9, kind: output, shape index: {}]
  %s10 = sld [smem:[#allocation0]]
  $region77: #{tpu_custom_call.1} parent=0
    _
  %s12 = ssub.s32 1, %s10
  %s13 = scalar_select 0, %s12, %s10
  $region1: #{tpu_custom_call.1} parent=0
    #allocation2 [shape = 'u8[65536]{0}', space=vmem, size = 0x10000, scoped, tag = 'input window, operand 3, single buffered']
    #allocation3 [shape = 's32[2]{0}', space=sflag, size = 0x8, scoped, tag = 'scoped memory for tpu_custom_call.1']
    #allocation4 [shape = 'u8[65536]{0}', space=vmem, size = 0x10000, scoped, tag = 'input window, operand 5, single buffered']
    #allocation5 [shape = 's32[1]{0}', space=sflag, size = 0x4, scoped, tag = 'scoped memory for tpu_custom_call.1']
    %14 = vsyncpa [#allocation3], 0
    %15 = vsyncpa [#allocation5], 0
    loop: start=0, step=1, limit=4
    $region2: #{tpu_custom_call.1} parent=1 // loop_pre_header
      _
    $region3: #{tpu_custom_call.1} parent=1 // loop_header
      %s17 = sphi 0, %s21
      %p18 = scmp.ge.s32.totalorder %s17, 4
      %s27 = sphi 0, %s29
      %s30 = sphi 0, %s27
      %s31 = sphi 0, %s30
      %s47 = sphi 0, %s31
      %s51 = sphi 0, %s51
      %s53 = sphi 0, %s51
      %s54 = sphi 0, %s53
      %s68 = sphi 0, %s54
      %s72 = sphi 0, %s72
      %s74 = sphi 0, %s72
      %s75 = sphi 0, %s74
      %s89 = sphi 0, %s75
      %s93 = sphi 0, %s93
      %s95 = sphi 0, %s93
      %s96 = sphi 0, %s95
      %s110 = sphi 0, %s96
      %s114 = sphi 0, %s114
      %s116 = sphi 0, %s114
      %s117 = sphi 0, %s116
      %s131 = sphi 0, %s117
      %s135 = sphi 0, %s135
      %s137 = sphi 0, %s135
      %s138 = sphi 0, %s137
      %s152 = sphi 0, %s138
      %s156 = sphi 0, %s156
      %s158 = sphi 0, %s156
      %s159 = sphi 0, %s158
      %s173 = sphi 0, %s159
      %s177 = sphi 0, %s177
      %s179 = sphi 0, %s177
      %s180 = sphi 0, %s179
      %s194 = sphi 0, %s180
      %s198 = sphi 0, %s198
      %s200 = sphi 0, %s198
      %s201 = sphi 0, %s200
      %s215 = sphi 0, %s201
      %s221 = sphi 0, %s223
      %s224 = sphi 0, %s221
      %s225 = sphi 0, %s224
      %s241 = sphi 0, %s225
    $region4: #{tpu_custom_call.1} parent=1 // loop_header_branch
      %20 = sbr.rel (%p18) target = $region8
    $region5: #{tpu_custom_call.1} parent=1 // loop_body
      %s22 = ssub.s32 %s17, 1
      %s23 = ssub.s32 %s17, 2
      %s24 = sadd.s32 %s17, 1
      %s25 = ssub.s32 %s17, %s24
      %p26 = scmp.eq.s32.totalorder %s25, 0
      %s28 = sadd.s32 %s27, 1
      %s29 = scalar_select %p26, %s27, %s28
      %p32 = pneg %p26
      %p33 = scmp.eq.s32.totalorder %s17, 1
      %p34 = por %p32, %p33
      %p35 = scmp.ne.s32.totalorder %s27, %s30
      %p36 = scmp.eq.s32.totalorder %s17, 0
      %p37 = por %p35, %p36
      %p38 = scmp.ne.s32.totalorder %s27, %s30
      %p39 = scmp.eq.s32.totalorder %s22, 1
      %p40 = por %p38, %p39
      %p41 = scmp.ne.s32.totalorder %s30, %s31
      %p42 = scmp.eq.s32.totalorder %s22, 0
      %p43 = por %p41, %p42
      %p44 = scmp.ne.s32.totalorder %s30, %s31
      %p45 = scmp.eq.s32.totalorder %s23, 1
      %p46 = por %p44, %p45
      %p48 = scmp.ne.s32.totalorder %s31, %s47
      %p49 = scmp.eq.s32.totalorder %s23, 0
      %p50 = por %p48, %p49
      %s52 = sadd.s32 %s51, 1
      %p55 = scmp.eq.s32.totalorder %s17, 1
      %p56 = scmp.ne.s32.totalorder %s51, %s53
      %p57 = scmp.eq.s32.totalorder %s17, 0
      %p58 = por %p56, %p57
      %p59 = scmp.ne.s32.totalorder %s51, %s53
      %p60 = scmp.eq.s32.totalorder %s22, 1
      %p61 = por %p59, %p60
      %p62 = scmp.ne.s32.totalorder %s53, %s54
      %p63 = scmp.eq.s32.totalorder %s22, 0
      %p64 = por %p62, %p63
      %p65 = scmp.ne.s32.totalorder %s53, %s54
      %p66 = scmp.eq.s32.totalorder %s23, 1
      %p67 = por %p65, %p66
      %p69 = scmp.ne.s32.totalorder %s54, %s68
      %p70 = scmp.eq.s32.totalorder %s23, 0
      %p71 = por %p69, %p70
      %s73 = sadd.s32 %s72, 1
      %p76 = scmp.eq.s32.totalorder %s17, 1
      %p77 = scmp.ne.s32.totalorder %s72, %s74
      %p78 = scmp.eq.s32.totalorder %s17, 0
      %p79 = por %p77, %p78
      %p80 = scmp.ne.s32.totalorder %s72, %s74
      %p81 = scmp.eq.s32.totalorder %s22, 1
      %p82 = por %p80, %p81
      %p83 = scmp.ne.s32.totalorder %s74, %s75
      %p84 = scmp.eq.s32.totalorder %s22, 0
      %p85 = por %p83, %p84
      %p86 = scmp.ne.s32.totalorder %s74, %s75
      %p87 = scmp.eq.s32.totalorder %s23, 1
      %p88 = por %p86, %p87
      %p90 = scmp.ne.s32.totalorder %s75, %s89
      %p91 = scmp.eq.s32.totalorder %s23, 0
      %p92 = por %p90, %p91
      %s94 = sadd.s32 %s93, 1
      %p97 = scmp.eq.s32.totalorder %s17, 1
      %p98 = scmp.ne.s32.totalorder %s93, %s95
      %p99 = scmp.eq.s32.totalorder %s17, 0
      %p100 = por %p98, %p99
      %p101 = scmp.ne.s32.totalorder %s93, %s95
      %p102 = scmp.eq.s32.totalorder %s22, 1
      %p103 = por %p101, %p102
      %p104 = scmp.ne.s32.totalorder %s95, %s96
      %p105 = scmp.eq.s32.totalorder %s22, 0
      %p106 = por %p104, %p105
      %p107 = scmp.ne.s32.totalorder %s95, %s96
      %p108 = scmp.eq.s32.totalorder %s23, 1
      %p109 = por %p107, %p108
      %p111 = scmp.ne.s32.totalorder %s96, %s110
      %p112 = scmp.eq.s32.totalorder %s23, 0
      %p113 = por %p111, %p112
      %s115 = sadd.s32 %s114, 1
      %p118 = scmp.eq.s32.totalorder %s17, 1
      %p119 = scmp.ne.s32.totalorder %s114, %s116
      %p120 = scmp.eq.s32.totalorder %s17, 0
      %p121 = por %p119, %p120
      %p122 = scmp.ne.s32.totalorder %s114, %s116
      %p123 = scmp.eq.s32.totalorder %s22, 1
      %p124 = por %p122, %p123
      %p125 = scmp.ne.s32.totalorder %s116, %s117
      %p126 = scmp.eq.s32.totalorder %s22, 0
      %p127 = por %p125, %p126
      %p128 = scmp.ne.s32.totalorder %s116, %s117
      %p129 = scmp.eq.s32.totalorder %s23, 1
      %p130 = por %p128, %p129
      %p132 = scmp.ne.s32.totalorder %s117, %s131
      %p133 = scmp.eq.s32.totalorder %s23, 0
      %p134 = por %p132, %p133
      %s136 = sadd.s32 %s135, 1
      %p139 = scmp.eq.s32.totalorder %s17, 1
      %p140 = scmp.ne.s32.totalorder %s135, %s137
      %p141 = scmp.eq.s32.totalorder %s17, 0
      %p142 = por %p140, %p141
      %p143 = scmp.ne.s32.totalorder %s135, %s137
      %p144 = scmp.eq.s32.totalorder %s22, 1
      %p145 = por %p143, %p144
      %p146 = scmp.ne.s32.totalorder %s137, %s138
      %p147 = scmp.eq.s32.totalorder %s22, 0
      %p148 = por %p146, %p147
      %p149 = scmp.ne.s32.totalorder %s137, %s138
      %p150 = scmp.eq.s32.totalorder %s23, 1
      %p151 = por %p149, %p150
      %p153 = scmp.ne.s32.totalorder %s138, %s152
      %p154 = scmp.eq.s32.totalorder %s23, 0
      %p155 = por %p153, %p154
      %s157 = sadd.s32 %s156, 1
      %p160 = scmp.eq.s32.totalorder %s17, 1
      %p161 = scmp.ne.s32.totalorder %s156, %s158
      %p162 = scmp.eq.s32.totalorder %s17, 0
      %p163 = por %p161, %p162
      %p164 = scmp.ne.s32.totalorder %s156, %s158
      %p165 = scmp.eq.s32.totalorder %s22, 1
      %p166 = por %p164, %p165
      %p167 = scmp.ne.s32.totalorder %s158, %s159
      %p168 = scmp.eq.s32.totalorder %s22, 0
      %p169 = por %p167, %p168
      %p170 = scmp.ne.s32.totalorder %s158, %s159
      %p171 = scmp.eq.s32.totalorder %s23, 1
      %p172 = por %p170, %p171
      %p174 = scmp.ne.s32.totalorder %s159, %s173
      %p175 = scmp.eq.s32.totalorder %s23, 0
      %p176 = por %p174, %p175
      %s178 = sadd.s32 %s177, 1
      %p181 = scmp.eq.s32.totalorder %s17, 1
      %p182 = scmp.ne.s32.totalorder %s177, %s179
      %p183 = scmp.eq.s32.totalorder %s17, 0
      %p184 = por %p182, %p183
      %p185 = scmp.ne.s32.totalorder %s177, %s179
      %p186 = scmp.eq.s32.totalorder %s22, 1
      %p187 = por %p185, %p186
      %p188 = scmp.ne.s32.totalorder %s179, %s180
      %p189 = scmp.eq.s32.totalorder %s22, 0
      %p190 = por %p188, %p189
      %p191 = scmp.ne.s32.totalorder %s179, %s180
      %p192 = scmp.eq.s32.totalorder %s23, 1
      %p193 = por %p191, %p192
      %p195 = scmp.ne.s32.totalorder %s180, %s194
      %p196 = scmp.eq.s32.totalorder %s23, 0
      %p197 = por %p195, %p196
      %s199 = sadd.s32 %s198, 1
      %p202 = scmp.eq.s32.totalorder %s17, 1
      %p203 = scmp.ne.s32.totalorder %s198, %s200
      %p204 = scmp.eq.s32.totalorder %s17, 0
      %p205 = por %p203, %p204
      %p206 = scmp.ne.s32.totalorder %s198, %s200
      %p207 = scmp.eq.s32.totalorder %s22, 1
      %p208 = por %p206, %p207
      %p209 = scmp.ne.s32.totalorder %s200, %s201
      %p210 = scmp.eq.s32.totalorder %s22, 0
      %p211 = por %p209, %p210
      %p212 = scmp.ne.s32.totalorder %s200, %s201
      %p213 = scmp.eq.s32.totalorder %s23, 1
      %p214 = por %p212, %p213
      %p216 = scmp.ne.s32.totalorder %s201, %s215
      %p217 = scmp.eq.s32.totalorder %s23, 0
      %p218 = por %p216, %p217
      %s219 = ssub.s32 %s17, %s24
      %p220 = scmp.eq.s32.totalorder %s219, 0
      %s222 = sadd.s32 %s221, 1
      %s223 = scalar_select %p220, %s221, %s222
      %p226 = pneg %p220
      %p227 = scmp.eq.s32.totalorder %s17, 1
      %p228 = por %p226, %p227
      %p229 = scmp.ne.s32.totalorder %s221, %s224
      %p230 = scmp.eq.s32.totalorder %s17, 0
      %p231 = por %p229, %p230
      %p232 = scmp.ne.s32.totalorder %s221, %s224
      %p233 = scmp.eq.s32.totalorder %s22, 1
      %p234 = por %p232, %p233
      %p235 = scmp.ne.s32.totalorder %s224, %s225
      %p236 = scmp.eq.s32.totalorder %s22, 0
      %p237 = por %p235, %p236
      %p238 = scmp.ne.s32.totalorder %s224, %s225
      %p239 = scmp.eq.s32.totalorder %s23, 1
      %p240 = por %p238, %p239
      %p242 = scmp.ne.s32.totalorder %s225, %s241
      %p243 = scmp.eq.s32.totalorder %s23, 0
      %p244 = por %p242, %p243
      %p245 = scmp.le.s32.totalorder 1, %s17
      %p246 = scmp.lt.s32.totalorder %s17, 3
      %p247 = pnand %p245, %p246
      %p248 = pneg %p247
      // Predicated region
      $region9: #{tpu_custom_call.1} parent=5 // pred_check
        _
      $region10: #{tpu_custom_call.1} parent=5 // pred_check_branch
        %250 = sbr.rel (%p247) target = $region12
      $region11: #{tpu_custom_call.1} parent=5 // pred_region
        %s251 = ssub.s32 %s17, 1
        // Predicated region
        $region13: #{tpu_custom_call.1} parent=11 // pred_check
          %p252 = pneg %p64
        $region14: #{tpu_custom_call.1} parent=11 // pred_check_branch
          %254 = sbr.rel (%p252) target = $region16
        $region15: #{tpu_custom_call.1} parent=11 // pred_region
          _
        $region16: #{tpu_custom_call.1} parent=11 // pred_fallthru
          _
        // Predicated region
        $region17: #{tpu_custom_call.1} parent=11 // pred_check
          %p255 = pneg %p85
        $region18: #{tpu_custom_call.1} parent=11 // pred_check_branch
          %257 = sbr.rel (%p255) target = $region20
        $region19: #{tpu_custom_call.1} parent=11 // pred_region
          _
        $region20: #{tpu_custom_call.1} parent=11 // pred_fallthru
          _
        // Predicated region
        $region21: #{tpu_custom_call.1} parent=11 // pred_check
          %p258 = pneg %p106
        $region22: #{tpu_custom_call.1} parent=11 // pred_check_branch
          %260 = sbr.rel (%p258) target = $region24
        $region23: #{tpu_custom_call.1} parent=11 // pred_region
          %s262 = ssub.s32 2048, 2048
          %263 = vsyncadd [#allocation3], %s262
          %s264 = sshll.u32 [#allocation2], 4
          %s265 = int_to_ptr.vmem [resolvable:$true] %s264
          %270 = dma.hbm_to_vmem [thread:$0]  %s3, 2048, %s265, [#allocation3], 128, 128, 8
        $region24: #{tpu_custom_call.1} parent=11 // pred_fallthru
          _
        // Predicated region
        $region25: #{tpu_custom_call.1} parent=11 // pred_check
          %p271 = pneg %p127
        $region26: #{tpu_custom_call.1} parent=11 // pred_check_branch
          %273 = sbr.rel (%p271) target = $region28
        $region27: #{tpu_custom_call.1} parent=11 // pred_region
          _
        $region28: #{tpu_custom_call.1} parent=11 // pred_fallthru
          _
        // Predicated region
        $region29: #{tpu_custom_call.1} parent=11 // pred_check
          %p274 = pneg %p148
        $region30: #{tpu_custom_call.1} parent=11 // pred_check_branch
          %276 = sbr.rel (%p274) target = $region32
        $region31: #{tpu_custom_call.1} parent=11 // pred_region
          %s278 = ssub.s32 2048, 2048
          %279 = vsyncadd [#allocation5], %s278
          %s280 = sshll.u32 [#allocation4], 4
          %s281 = int_to_ptr.vmem [resolvable:$true] %s280
          %286 = dma.hbm_to_vmem [thread:$0]  %s5, 2048, %s281, [#allocation5], 64, 64, 4
        $region32: #{tpu_custom_call.1} parent=11 // pred_fallthru
          _
        // Predicated region
        $region33: #{tpu_custom_call.1} parent=11 // pred_check
          %p287 = pneg %p169
        $region34: #{tpu_custom_call.1} parent=11 // pred_check_branch
          %289 = sbr.rel (%p287) target = $region36
        $region35: #{tpu_custom_call.1} parent=11 // pred_region
          _
        $region36: #{tpu_custom_call.1} parent=11 // pred_fallthru
          _
        // Predicated region
        $region37: #{tpu_custom_call.1} parent=11 // pred_check
          %p290 = pneg %p190
        $region38: #{tpu_custom_call.1} parent=11 // pred_check_branch
          %292 = sbr.rel (%p290) target = $region40
        $region39: #{tpu_custom_call.1} parent=11 // pred_region
          _
        $region40: #{tpu_custom_call.1} parent=11 // pred_fallthru
          _
        // Predicated region
        $region41: #{tpu_custom_call.1} parent=11 // pred_check
          %p293 = pneg %p211
        $region42: #{tpu_custom_call.1} parent=11 // pred_check_branch
          %295 = sbr.rel (%p293) target = $region44
        $region43: #{tpu_custom_call.1} parent=11 // pred_region
          _
        $region44: #{tpu_custom_call.1} parent=11 // pred_fallthru
          _
      $region12: #{tpu_custom_call.1} parent=5 // pred_fallthru
        _
      %p296 = scmp.lt.s32.totalorder %s17, 2
      // Predicated region
      $region45: #{tpu_custom_call.1} parent=5 // pred_check
        %p297 = pneg %p296
      $region46: #{tpu_custom_call.1} parent=5 // pred_check_branch
        %299 = sbr.rel (%p297) target = $region48
      $region47: #{tpu_custom_call.1} parent=5 // pred_region
        // Predicated region
        $region49: #{tpu_custom_call.1} parent=47 // pred_check
          %p300 = pneg %p37
        $region50: #{tpu_custom_call.1} parent=47 // pred_check_branch
          %302 = sbr.rel (%p300) target = $region52
        $region51: #{tpu_custom_call.1} parent=47 // pred_region
          %s303 = smul.u32 2, %s17
          %p304 = scmp.lt.s32.totalorder %s303, 3
          %s305 = scalar_select %p304, %s303, 3
          %s306 = smul.addr %s305, 4
          %s307 = scalar_lea.vmem %s0, %s306
          %s308 = smul.u32 2, %s17
        $region52: #{tpu_custom_call.1} parent=47 // pred_fallthru
          _
      $region48: #{tpu_custom_call.1} parent=5 // pred_fallthru
        _
      %p309 = scmp.le.s32.totalorder 1, %s17
      %p310 = scmp.lt.s32.totalorder %s17, 3
      %p311 = pnand %p309, %p310
      %p312 = pneg %p311
      // Predicated region
      $region53: #{tpu_custom_call.1} parent=5 // pred_check
        _
      $region54: #{tpu_custom_call.1} parent=5 // pred_check_branch
        %314 = sbr.rel (%p311) target = $region56
      $region55: #{tpu_custom_call.1} parent=5 // pred_region
        %s315 = ssub.s32 %s17, 1
        // Predicated region
        $region57: #{tpu_custom_call.1} parent=55 // pred_check
          %p316 = pneg %p106
        $region58: #{tpu_custom_call.1} parent=55 // pred_check_branch
          %318 = sbr.rel (%p316) target = $region60
        $region59: #{tpu_custom_call.1} parent=55 // pred_region
          %319 = dma.done [#allocation3], 2048
        $region60: #{tpu_custom_call.1} parent=55 // pred_fallthru
          _
        // Predicated region
        $region61: #{tpu_custom_call.1} parent=55 // pred_check
          %p320 = pneg %p148
        $region62: #{tpu_custom_call.1} parent=55 // pred_check_branch
          %322 = sbr.rel (%p320) target = $region64
        $region63: #{tpu_custom_call.1} parent=55 // pred_region
          %323 = dma.done [#allocation5], 2048
        $region64: #{tpu_custom_call.1} parent=55 // pred_fallthru
          _
        %s324 = smul.u32 2, %s22
        %p325 = scmp.lt.s32.totalorder %s324, 3
        %s326 = scalar_select %p325, %s324, 3
        %s327 = smul.addr %s326, 4
        %s328 = scalar_lea.vmem %s0, %s327
        %p329 = pneg %p43
        %p330 = pneg %p40
        %p331 = pneg %p64
        %p332 = pneg %p61
        %p333 = pneg %p85
        %p334 = pneg %p82
        %p335 = pneg %p106
        %p336 = pneg %p103
        %p337 = pneg %p127
        %p338 = pneg %p124
        %p339 = pneg %p148
        %p340 = pneg %p145
        %p341 = pneg %p169
        %p342 = pneg %p166
        %p343 = pneg %p190
        %p344 = pneg %p187
        %p345 = pneg %p211
        %p346 = pneg %p208
        %p347 = pneg %p237
        %p348 = pneg %p234
        %s349 = smul.u32 2, %s22
        %p350 = scmp.lt.s32.totalorder %s349, 3
        %s351 = scalar_select %p350, %s349, 3
        %s352 = smul.addr %s351, 8
        %s353 = scalar_lea.vmem %s9, %s352
        %s354 = smul.u32 2, %s22
        %p355 = scmp.lt.s32.totalorder %s354, 3
        %s356 = scalar_select %p355, %s354, 3
        %s357 = smul.addr %s356, 4
        %s358 = scalar_lea.vmem %s0, %s357
        %s359 = smul.u32 2, %s22
        %s360 = smul.u32 2, %s22
        %p361 = scmp.lt.s32.totalorder %s360, 3
        %s362 = scalar_select %p361, %s360, 3
        %s363 = smul.addr %s362, 8
        %s364 = scalar_lea.vmem %s9, %s363
        %s365 = smul.u32 2, %s22
        %v367 = vld [vmem:[%s358] sm:$0xf]
        %v368 = vld [vmem:[%s358 + $0x4] sm:$0xf]
        %v369 = vld [vmem:[%s1] sm:$0xf]
        %v370 = vld [vmem:[%s2] sm:$0x1]
        %v372 = vlaneseq
        %v373 = vshrl.u32 %v372, 7
        %v374 = vsub.s32 0, %v373
        %v375 = vrot.slane %v370, %v374
        %v379 = vunpack.c.l.b16 %v367
        %v380 = vunpack.c.l.b16 %v368
        %v381 = vpack.c.b16 %v380, %v379
        %vm382 = vcmask 64512
        %v384 = vsel %vm382, %v381, 0
        %vm386 = vcmask 1043456
        %v388 = vsel %vm386, %v369, 0
        %390 = vmatprep.subr.bf16.mxu0 0
        %391 = vmatpush1.bf16.msra.mxu0 0
        %392 = vmatprep.subr.bf16.mxu0 0
        %393 = vmatpush1.bf16.msra.mxu0 0
        %394 = vmatprep.subr.bf16.mxu0 0
        %395 = vmatpush1.bf16.msra.mxu0 0
        %396 = vmatprep.subr.bf16.mxu0 0
        %397 = vmatpush1.bf16.msra.mxu0 0
        %398 = vmatprep.subr.bf16.mxu0 0
        %399 = vmatpush1.bf16.msra.mxu0 0
        %400 = vmatprep.subr.bf16.mxu0 0
        %401 = vmatpush1.bf16.msra.mxu0 0
        %402 = vmatprep.subr.bf16.mxu0 0
        %403 = vmatpush1.bf16.msra.mxu0 0
        %404 = vmatprep.subr.bf16.mxu0 0
        %405 = vmatpush1.bf16.msra.mxu0 %v388
        %406 = vmatprep.subr.bf16.mxu0 0
        %407 = vmatpush2.bf16.msra.mxu0 0
        %408 = vmatprep.subr.bf16.mxu0 0
        %409 = vmatpush2.bf16.msra.mxu0 0
        %410 = vmatprep.subr.bf16.mxu0 0
        %411 = vmatpush2.bf16.msra.mxu0 0
        %412 = vmatprep.subr.bf16.mxu0 0
        %413 = vmatpush2.bf16.msra.mxu0 0
        %414 = vmatprep.subr.bf16.mxu0 0
        %415 = vmatpush2.bf16.msra.mxu0 0
        %416 = vmatprep.subr.bf16.mxu0 0
        %417 = vmatpush2.bf16.msra.mxu0 0
        %418 = vmatprep.subr.bf16.mxu0 0
        %419 = vmatpush2.bf16.msra.mxu0 0
        %420 = vmatprep.subr.bf16.mxu0 0
        %421 = vmatpush2.bf16.msra.mxu0 0
        %422 = vmatprep.mubr.bf16.mxu0 0
        %423 = vmatmul.mubr.bf16.gmra.mxu0 %v384
        %v424 = vpop.f32.mrf.mxu0
        %v425 = vadd.f32 %v375, %v424
        %v426 = vpop.f32.mrf.mxu0
        %v427 = vpop.f32.mrf.mxu0
        %v428 = vadd.f32 %v375, %v427
        %v429 = vpop.f32.mrf.mxu0
        %430 = vdwg.mxu0
        %v431 = vmax.f32 %v425, 0.0
        %v432 = vmax.f32 %v428, 0.0
        %v433 = vpack.c.bf16 %v432, %v431
        %v434 = vld [vmem:[#allocation2] sm:$0xff]
        %v435 = vld [vmem:[#allocation2 + $0x8] sm:$0xff]
        %v436 = vld [vmem:[#allocation2 + $0x10] sm:$0xff]
        %v437 = vld [vmem:[#allocation2 + $0x18] sm:$0xff]
        %v438 = vld [vmem:[#allocation2 + $0x20] sm:$0xff]
        %v439 = vld [vmem:[#allocation2 + $0x28] sm:$0xff]
        %v440 = vld [vmem:[#allocation2 + $0x30] sm:$0xff]
        %v441 = vld [vmem:[#allocation2 + $0x38] sm:$0xff]
        %v442 = vld [vmem:[#allocation2 + $0x40] sm:$0xff]
        %v443 = vld [vmem:[#allocation2 + $0x48] sm:$0xff]
        %v444 = vld [vmem:[#allocation2 + $0x50] sm:$0xff]
        %v445 = vld [vmem:[#allocation2 + $0x58] sm:$0xff]
        %v446 = vld [vmem:[#allocation2 + $0x60] sm:$0xff]
        %v447 = vld [vmem:[#allocation2 + $0x68] sm:$0xff]
        %v448 = vld [vmem:[#allocation2 + $0x70] sm:$0xff]
        %v449 = vld [vmem:[#allocation2 + $0x78] sm:$0xff]
        %v450 = vld [vmem:[%s4] sm:$0x3]
        %v452 = vlaneseq
        %v453 = vshrl.u32 %v452, 7
        %v454 = vsub.s32 0, %v453
        %v455 = vrot.slane %v450, %v454
        %v456 = vlaneseq
        %v457 = vshrl.u32 %v456, 7
        %v458 = vsub.s32 1, %v457
        %v459 = vrot.slane %v450, %v458
        %v478 = vunpack.c.l.b16 %v434
        %v479 = vunpack.c.h.b16 %v434
        %v480 = vunpack.c.l.b16 %v435
        %v481 = vunpack.c.h.b16 %v435
        %v482 = vunpack.c.l.b16 %v436
        %v483 = vunpack.c.h.b16 %v436
        %v484 = vunpack.c.l.b16 %v437
        %v485 = vunpack.c.h.b16 %v437
        %v486 = vunpack.c.l.b16 %v438
        %v487 = vunpack.c.h.b16 %v438
        %v488 = vunpack.c.l.b16 %v439
        %v489 = vunpack.c.h.b16 %v439
        %v490 = vunpack.c.l.b16 %v440
        %v491 = vunpack.c.h.b16 %v440
        %v492 = vunpack.c.l.b16 %v441
        %v493 = vunpack.c.h.b16 %v441
        %v494 = vunpack.c.l.b16 %v442
        %v495 = vunpack.c.h.b16 %v442
        %v496 = vunpack.c.l.b16 %v443
        %v497 = vunpack.c.h.b16 %v443
        %v498 = vunpack.c.l.b16 %v444
        %v499 = vunpack.c.h.b16 %v444
        %v500 = vunpack.c.l.b16 %v445
        %v501 = vunpack.c.h.b16 %v445
        %v502 = vunpack.c.l.b16 %v446
        %v503 = vunpack.c.h.b16 %v446
        %v504 = vunpack.c.l.b16 %v447
        %v505 = vunpack.c.h.b16 %v447
        %v506 = vunpack.c.l.b16 %v448
        %v507 = vunpack.c.h.b16 %v448
        %v508 = vunpack.c.l.b16 %v449
        %v509 = vunpack.c.h.b16 %v449
        %v510 = vpack.c.b16 %v480, %v478
        %v511 = vpack.c.b16 %v481, %v479
        %v512 = vpack.c.b16 %v484, %v482
        %v513 = vpack.c.b16 %v485, %v483
        %v514 = vpack.c.b16 %v488, %v486
        %v515 = vpack.c.b16 %v489, %v487
        %v516 = vpack.c.b16 %v492, %v490
        %v517 = vpack.c.b16 %v493, %v491
        %v518 = vpack.c.b16 %v496, %v494
        %v519 = vpack.c.b16 %v497, %v495
        %v520 = vpack.c.b16 %v500, %v498
        %v521 = vpack.c.b16 %v501, %v499
        %v522 = vpack.c.b16 %v504, %v502
        %v523 = vpack.c.b16 %v505, %v503
        %v524 = vpack.c.b16 %v508, %v506
        %v525 = vpack.c.b16 %v509, %v507
        %542 = vmatprep.subr.bf16.mxu0 %v525
        %543 = vmatpush1.bf16.msra.mxu0 %v524
        %544 = vmatprep.subr.bf16.mxu0 %v523
        %545 = vmatpush1.bf16.msra.mxu0 %v522
        %546 = vmatprep.subr.bf16.mxu0 %v521
        %547 = vmatpush1.bf16.msra.mxu0 %v520
        %548 = vmatprep.subr.bf16.mxu0 %v519
        %549 = vmatpush1.bf16.msra.mxu0 %v518
        %550 = vmatprep.subr.bf16.mxu0 %v517
        %551 = vmatpush1.bf16.msra.mxu0 %v516
        %552 = vmatprep.subr.bf16.mxu0 %v515
        %553 = vmatpush1.bf16.msra.mxu0 %v514
        %554 = vmatprep.subr.bf16.mxu0 %v513
        %555 = vmatpush1.bf16.msra.mxu0 %v512
        %556 = vmatprep.subr.bf16.mxu0 %v511
        %557 = vmatpush1.bf16.msra.mxu0 %v510
        %558 = vmatprep.subr.bf16.mxu0 0
        %559 = vmatpush2.bf16.msra.mxu0 0
        %560 = vmatprep.subr.bf16.mxu0 0
        %561 = vmatpush2.bf16.msra.mxu0 0
        %562 = vmatprep.subr.bf16.mxu0 0
        %563 = vmatpush2.bf16.msra.mxu0 0
        %564 = vmatprep.subr.bf16.mxu0 0
        %565 = vmatpush2.bf16.msra.mxu0 0
        %566 = vmatprep.subr.bf16.mxu0 0
        %567 = vmatpush2.bf16.msra.mxu0 0
        %568 = vmatprep.subr.bf16.mxu0 0
        %569 = vmatpush2.bf16.msra.mxu0 0
        %570 = vmatprep.subr.bf16.mxu0 0
        %571 = vmatpush2.bf16.msra.mxu0 0
        %572 = vmatprep.subr.bf16.mxu0 0
        %573 = vmatpush2.bf16.msra.mxu0 0
        %574 = vmatprep.mubr.bf16.mxu0 0
        %575 = vmatmul.mubr.bf16.gmra.mxu0 %v433
        %v576 = vpop.f32.mrf.mxu0
        %v577 = vadd.f32 %v455, %v576
        %v578 = vpop.f32.mrf.mxu0
        %v579 = vadd.f32 %v459, %v578
        %v580 = vpop.f32.mrf.mxu0
        %v581 = vadd.f32 %v455, %v580
        %v582 = vpop.f32.mrf.mxu0
        %v583 = vadd.f32 %v459, %v582
        %584 = vdwg.mxu0
        %v585 = vmax.f32 %v577, 0.0
        %v586 = vmax.f32 %v579, 0.0
        %v587 = vmax.f32 %v581, 0.0
        %v588 = vmax.f32 %v583, 0.0
        %v589 = vpack.c.bf16 %v587, %v585
        %v590 = vpack.c.bf16 %v588, %v586
        %v591 = vld [vmem:[#allocation4] sm:$0xf]
        %v592 = vld [vmem:[#allocation4 + $0x4] sm:$0xf]
        %v593 = vld [vmem:[#allocation4 + $0x8] sm:$0xf]
        %v594 = vld [vmem:[#allocation4 + $0xc] sm:$0xf]
        %v595 = vld [vmem:[#allocation4 + $0x10] sm:$0xf]
        %v596 = vld [vmem:[#allocation4 + $0x14] sm:$0xf]
        %v597 = vld [vmem:[#allocation4 + $0x18] sm:$0xf]
        %v598 = vld [vmem:[#allocation4 + $0x1c] sm:$0xf]
        %v599 = vld [vmem:[#allocation4 + $0x20] sm:$0xf]
        %v600 = vld [vmem:[#allocation4 + $0x24] sm:$0xf]
        %v601 = vld [vmem:[#allocation4 + $0x28] sm:$0xf]
        %v602 = vld [vmem:[#allocation4 + $0x2c] sm:$0xf]
        %v603 = vld [vmem:[#allocation4 + $0x30] sm:$0xf]
        %v604 = vld [vmem:[#allocation4 + $0x34] sm:$0xf]
        %v605 = vld [vmem:[#allocation4 + $0x38] sm:$0xf]
        %v606 = vld [vmem:[#allocation4 + $0x3c] sm:$0xf]
        %v607 = vld [vmem:[#allocation4 + $0x40] sm:$0xf]
        %v608 = vld [vmem:[#allocation4 + $0x44] sm:$0xf]
        %v609 = vld [vmem:[#allocation4 + $0x48] sm:$0xf]
        %v610 = vld [vmem:[#allocation4 + $0x4c] sm:$0xf]
        %v611 = vld [vmem:[#allocation4 + $0x50] sm:$0xf]
        %v612 = vld [vmem:[#allocation4 + $0x54] sm:$0xf]
        %v613 = vld [vmem:[#allocation4 + $0x58] sm:$0xf]
        %v614 = vld [vmem:[#allocation4 + $0x5c] sm:$0xf]
        %v615 = vld [vmem:[#allocation4 + $0x60] sm:$0xf]
        %v616 = vld [vmem:[#allocation4 + $0x64] sm:$0xf]
        %v617 = vld [vmem:[#allocation4 + $0x68] sm:$0xf]
        %v618 = vld [vmem:[#allocation4 + $0x6c] sm:$0xf]
        %v619 = vld [vmem:[#allocation4 + $0x70] sm:$0xf]
        %v620 = vld [vmem:[#allocation4 + $0x74] sm:$0xf]
        %v621 = vld [vmem:[#allocation4 + $0x78] sm:$0xf]
        %v622 = vld [vmem:[#allocation4 + $0x7c] sm:$0xf]
        %v623 = vld [vmem:[%s6] sm:$0x1]
        %v625 = vlaneseq
        %v626 = vshrl.u32 %v625, 7
        %v627 = vsub.s32 0, %v626
        %v628 = vrot.slane %v623, %v627
        %v662 = vunpack.c.l.b16 %v591
        %v663 = vunpack.c.l.b16 %v592
        %v664 = vunpack.c.l.b16 %v593
        %v665 = vunpack.c.l.b16 %v594
        %v666 = vunpack.c.l.b16 %v595
        %v667 = vunpack.c.l.b16 %v596
        %v668 = vunpack.c.l.b16 %v597
        %v669 = vunpack.c.l.b16 %v598
        %v670 = vunpack.c.l.b16 %v599
        %v671 = vunpack.c.l.b16 %v600
        %v672 = vunpack.c.l.b16 %v601
        %v673 = vunpack.c.l.b16 %v602
        %v674 = vunpack.c.l.b16 %v603
        %v675 = vunpack.c.l.b16 %v604
        %v676 = vunpack.c.l.b16 %v605
        %v677 = vunpack.c.l.b16 %v606
        %v678 = vunpack.c.l.b16 %v607
        %v679 = vunpack.c.l.b16 %v608
        %v680 = vunpack.c.l.b16 %v609
        %v681 = vunpack.c.l.b16 %v610
        %v682 = vunpack.c.l.b16 %v611
        %v683 = vunpack.c.l.b16 %v612
        %v684 = vunpack.c.l.b16 %v613
        %v685 = vunpack.c.l.b16 %v614
        %v686 = vunpack.c.l.b16 %v615
        %v687 = vunpack.c.l.b16 %v616
        %v688 = vunpack.c.l.b16 %v617
        %v689 = vunpack.c.l.b16 %v618
        %v690 = vunpack.c.l.b16 %v619
        %v691 = vunpack.c.l.b16 %v620
        %v692 = vunpack.c.l.b16 %v621
        %v693 = vunpack.c.l.b16 %v622
        %v694 = vpack.c.b16 %v663, %v662
        %v695 = vpack.c.b16 %v665, %v664
        %v696 = vpack.c.b16 %v667, %v666
        %v697 = vpack.c.b16 %v669, %v668
        %v698 = vpack.c.b16 %v671, %v670
        %v699 = vpack.c.b16 %v673, %v672
        %v700 = vpack.c.b16 %v675, %v674
        %v701 = vpack.c.b16 %v677, %v676
        %v702 = vpack.c.b16 %v679, %v678
        %v703 = vpack.c.b16 %v681, %v680
        %v704 = vpack.c.b16 %v683, %v682
        %v705 = vpack.c.b16 %v685, %v684
        %v706 = vpack.c.b16 %v687, %v686
        %v707 = vpack.c.b16 %v689, %v688
        %v708 = vpack.c.b16 %v691, %v690
        %v709 = vpack.c.b16 %v693, %v692
        %726 = vmatprep.subr.bf16.mxu0 0
        %727 = vmatpush1.bf16.msra.mxu0 %v701
        %728 = vmatprep.subr.bf16.mxu0 0
        %729 = vmatpush1.bf16.msra.mxu0 %v700
        %730 = vmatprep.subr.bf16.mxu0 0
        %731 = vmatpush1.bf16.msra.mxu0 %v699
        %732 = vmatprep.subr.bf16.mxu0 0
        %733 = vmatpush1.bf16.msra.mxu0 %v698
        %734 = vmatprep.subr.bf16.mxu0 0
        %735 = vmatpush1.bf16.msra.mxu0 %v697
        %736 = vmatprep.subr.bf16.mxu0 0
        %737 = vmatpush1.bf16.msra.mxu0 %v696
        %738 = vmatprep.subr.bf16.mxu0 0
        %739 = vmatpush1.bf16.msra.mxu0 %v695
        %740 = vmatprep.subr.bf16.mxu0 0
        %741 = vmatpush1.bf16.msra.mxu0 %v694
        %742 = vmatprep.subr.bf16.mxu0 0
        %743 = vmatpush2.bf16.msra.mxu0 %v709
        %744 = vmatprep.subr.bf16.mxu0 0
        %745 = vmatpush2.bf16.msra.mxu0 %v708
        %746 = vmatprep.subr.bf16.mxu0 0
        %747 = vmatpush2.bf16.msra.mxu0 %v707
        %748 = vmatprep.subr.bf16.mxu0 0
        %749 = vmatpush2.bf16.msra.mxu0 %v706
        %750 = vmatprep.subr.bf16.mxu0 0
        %751 = vmatpush2.bf16.msra.mxu0 %v705
        %752 = vmatprep.subr.bf16.mxu0 0
        %753 = vmatpush2.bf16.msra.mxu0 %v704
        %754 = vmatprep.subr.bf16.mxu0 0
        %755 = vmatpush2.bf16.msra.mxu0 %v703
        %756 = vmatprep.subr.bf16.mxu0 0
        %757 = vmatpush2.bf16.msra.mxu0 %v702
        %758 = vmatprep.mubr.bf16.mxu0 %v590
        %759 = vmatmul.mubr.bf16.gmra.mxu0 %v589
        %v760 = vpop.f32.mrf.mxu0
        %v761 = vadd.f32 %v628, %v760
        %v762 = vpop.f32.mrf.mxu0
        %v763 = vpop.f32.mrf.mxu0
        %v764 = vadd.f32 %v628, %v763
        %v765 = vpop.f32.mrf.mxu0
        %766 = vdwg.mxu0
        %v767 = vmax.f32 %v761, 0.0
        %v768 = vmax.f32 %v764, 0.0
        %v769 = vpack.c.bf16 %v768, %v767
        %v770 = vld [vmem:[%s7] sm:$0xf]
        %v771 = vld [vmem:[%s7 + $0x4] sm:$0xf]
        %v772 = vld [vmem:[%s7 + $0x8] sm:$0xf]
        %v773 = vld [vmem:[%s7 + $0xc] sm:$0xf]
        %v774 = vld [vmem:[%s7 + $0x10] sm:$0xf]
        %v775 = vld [vmem:[%s7 + $0x14] sm:$0xf]
        %v776 = vld [vmem:[%s7 + $0x18] sm:$0xf]
        %v777 = vld [vmem:[%s7 + $0x1c] sm:$0xf]
        %v778 = vld [vmem:[%s7 + $0x20] sm:$0xf]
        %v779 = vld [vmem:[%s7 + $0x24] sm:$0xf]
        %v780 = vld [vmem:[%s7 + $0x28] sm:$0xf]
        %v781 = vld [vmem:[%s7 + $0x2c] sm:$0xf]
        %v782 = vld [vmem:[%s7 + $0x30] sm:$0xf]
        %v783 = vld [vmem:[%s7 + $0x34] sm:$0xf]
        %v784 = vld [vmem:[%s7 + $0x38] sm:$0xf]
        %v785 = vld [vmem:[%s7 + $0x3c] sm:$0xf]
        %v786 = vld [vmem:[%s8] sm:$0x1]
        %v788 = vlaneseq
        %v789 = vshrl.u32 %v788, 7
        %v790 = vsub.s32 0, %v789
        %v791 = vrot.slane %v786, %v790
        %v809 = vunpack.c.l.b16 %v770
        %v810 = vunpack.c.l.b16 %v771
        %v811 = vunpack.c.l.b16 %v772
        %v812 = vunpack.c.l.b16 %v773
        %v813 = vunpack.c.l.b16 %v774
        %v814 = vunpack.c.l.b16 %v775
        %v815 = vunpack.c.l.b16 %v776
        %v816 = vunpack.c.l.b16 %v777
        %v817 = vunpack.c.l.b16 %v778
        %v818 = vunpack.c.l.b16 %v779
        %v819 = vunpack.c.l.b16 %v780
        %v820 = vunpack.c.l.b16 %v781
        %v821 = vunpack.c.l.b16 %v782
        %v822 = vunpack.c.l.b16 %v783
        %v823 = vunpack.c.l.b16 %v784
        %v824 = vunpack.c.l.b16 %v785
        %v825 = vpack.c.b16 %v810, %v809
        %v826 = vpack.c.b16 %v812, %v811
        %v827 = vpack.c.b16 %v814, %v813
        %v828 = vpack.c.b16 %v816, %v815
        %v829 = vpack.c.b16 %v818, %v817
        %v830 = vpack.c.b16 %v820, %v819
        %v831 = vpack.c.b16 %v822, %v821
        %v832 = vpack.c.b16 %v824, %v823
        %841 = vmatprep.subr.bf16.mxu0 0
        %842 = vmatpush1.bf16.msra.mxu0 %v832
        %843 = vmatprep.subr.bf16.mxu0 0
        %844 = vmatpush1.bf16.msra.mxu0 %v831
        %845 = vmatprep.subr.bf16.mxu0 0
        %846 = vmatpush1.bf16.msra.mxu0 %v830
        %847 = vmatprep.subr.bf16.mxu0 0
        %848 = vmatpush1.bf16.msra.mxu0 %v829
        %849 = vmatprep.subr.bf16.mxu0 0
        %850 = vmatpush1.bf16.msra.mxu0 %v828
        %851 = vmatprep.subr.bf16.mxu0 0
        %852 = vmatpush1.bf16.msra.mxu0 %v827
        %853 = vmatprep.subr.bf16.mxu0 0
        %854 = vmatpush1.bf16.msra.mxu0 %v826
        %855 = vmatprep.subr.bf16.mxu0 0
        %856 = vmatpush1.bf16.msra.mxu0 %v825
        %857 = vmatprep.subr.bf16.mxu0 0
        %858 = vmatpush2.bf16.msra.mxu0 0
        %859 = vmatprep.subr.bf16.mxu0 0
        %860 = vmatpush2.bf16.msra.mxu0 0
        %861 = vmatprep.subr.bf16.mxu0 0
        %862 = vmatpush2.bf16.msra.mxu0 0
        %863 = vmatprep.subr.bf16.mxu0 0
        %864 = vmatpush2.bf16.msra.mxu0 0
        %865 = vmatprep.subr.bf16.mxu0 0
        %866 = vmatpush2.bf16.msra.mxu0 0
        %867 = vmatprep.subr.bf16.mxu0 0
        %868 = vmatpush2.bf16.msra.mxu0 0
        %869 = vmatprep.subr.bf16.mxu0 0
        %870 = vmatpush2.bf16.msra.mxu0 0
        %871 = vmatprep.subr.bf16.mxu0 0
        %872 = vmatpush2.bf16.msra.mxu0 0
        %873 = vmatprep.mubr.bf16.mxu0 0
        %874 = vmatmul.mubr.bf16.gmra.mxu0 %v769
        %v875 = vpop.f32.mrf.mxu0
        %v876 = vadd.f32 %v791, %v875
        %v877 = vpop.f32.mrf.mxu0
        %v878 = vpop.f32.mrf.mxu0
        %v879 = vadd.f32 %v791, %v878
        %v880 = vpop.f32.mrf.mxu0
        %881 = vdwg.mxu0
        %vm882 = vcmask 31744
        %883 = vst.msk [vmem:[%s364] sm:$0xff] %vm882, %v876
        %884 = vst.msk [vmem:[%s364 + $0x8] sm:$0xff] %vm882, %v879
        %s885 = smul.u32 2, %s22
        %p886 = scmp.lt.s32.totalorder %s885, 3
        %s887 = scalar_select %p886, %s885, 3
        %s888 = smul.addr %s887, 8
        %s889 = scalar_lea.vmem %s9, %s888
        // Predicated region
        $region65: #{tpu_custom_call.1} parent=55 // pred_check
          %p890 = pneg %p234
        $region66: #{tpu_custom_call.1} parent=55 // pred_check_branch
          %892 = sbr.rel (%p890) target = $region68
        $region67: #{tpu_custom_call.1} parent=55 // pred_region
          %s893 = smul.u32 2, %s22
        $region68: #{tpu_custom_call.1} parent=55 // pred_fallthru
          _
      $region56: #{tpu_custom_call.1} parent=5 // pred_fallthru
        _
      %p894 = scmp.le.s32.totalorder 2, %s17
      // Predicated region
      $region69: #{tpu_custom_call.1} parent=5 // pred_check
        %p895 = pneg %p894
      $region70: #{tpu_custom_call.1} parent=5 // pred_check_branch
        %897 = sbr.rel (%p895) target = $region72
      $region71: #{tpu_custom_call.1} parent=5 // pred_region
        %s898 = ssub.s32 %s17, 2
        // Predicated region
        $region73: #{tpu_custom_call.1} parent=71 // pred_check
          %p899 = pneg %p240
        $region74: #{tpu_custom_call.1} parent=71 // pred_check_branch
          %901 = sbr.rel (%p899) target = $region76
        $region75: #{tpu_custom_call.1} parent=71 // pred_region
          %s902 = smul.u32 2, %s23
          %p903 = scmp.lt.s32.totalorder %s902, 3
          %s904 = scalar_select %p903, %s902, 3
          %s905 = smul.addr %s904, 8
          %s906 = scalar_lea.vmem %s9, %s905
        $region76: #{tpu_custom_call.1} parent=71 // pred_fallthru
          _
      $region72: #{tpu_custom_call.1} parent=5 // pred_fallthru
        _
    $region6: #{tpu_custom_call.1} parent=1 // loop_footer
      %s21 = sadd.s32 1, %s17
    $region7: #{tpu_custom_call.1} parent=1 // loop_footer_branch
      %16 = sbr.rel target = $region3
    $region8: #{tpu_custom_call.1} parent=1 // loop_exit
      _
    %907 = vsyncpa [#allocation3], 1
    %s908 = scalar_lea.sflag [#allocation3], 1
    %909 = vsyncpa %s908, 1
    %910 = vsyncpa [#allocation5], 1

</llo_original>
